<compile_context>
chip_gen: v6e
topology: v6e:2x2x1
jax: 0.10.0
libtpu: 0.0.40
codegen_flags: <defaults>
</compile_context>

<pallas_src>
import jax
import jax.numpy as jnp
from jax.experimental import pallas as pl
from jax.experimental.pallas import tpu as pltpu

LANE = 128
TILE_ROWS = 1024  # 1024 * 128 * 4 B = 512 KiB per block buffer


def _complex_sigmoid_kernel(re_ref, im_ref, ore_ref, oim_ref):
    # Pure streaming elementwise op on both planes.
    ore_ref[...] = jax.nn.sigmoid(re_ref[...])
    oim_ref[...] = jax.nn.sigmoid(im_ref[...])


def _pallas_sigmoid_pair(re_slab, im_slab):
    rows, cols = re_slab.shape
    assert cols == LANE and im_slab.shape == re_slab.shape

    if rows <= TILE_ROWS:
        tile_rows = rows        # single full-extent block (always a legal block)
    else:
        tile_rows = TILE_ROWS   # multiple of 8; ragged last block is masked

    grid = (pl.cdiv(rows, tile_rows),)
    spec = pl.BlockSpec((tile_rows, LANE), lambda i: (i, 0))

    return pl.pallas_call(
        _complex_sigmoid_kernel,
        out_shape=(
            jax.ShapeDtypeStruct((rows, LANE), jnp.float32),
            jax.ShapeDtypeStruct((rows, LANE), jnp.float32),
        ),
        grid_spec=pltpu.PrefetchScalarGridSpec(
            num_scalar_prefetch=0,
            grid=grid,
            in_specs=[spec, spec],
            out_specs=[spec, spec],
        ),
        input_output_aliases={0: 0, 1: 1},
        compiler_params=pltpu.CompilerParams(
            dimension_semantics=("parallel",),
        ),
    )(re_slab, im_slab)


@jax.jit
def complex_sigmoid(x):
    """x: complex array of any shape (e.g. NCHW). Returns sigmoid(re)+i*sigmoid(im)."""
    # TODO(synk): complex128 inputs are computed in float32 and returned as
    # complex64 (TPU has no native f64 vector path).
    re = jnp.real(x).astype(jnp.float32).reshape(-1)
    im = jnp.imag(x).astype(jnp.float32).reshape(-1)

    n = re.shape[0]            # number of complex elements
    rem = n % LANE
    if rem:                    # rare fallback: needs a (copying) pad + slice
        pad = LANE - rem
        re = jnp.pad(re, (0, pad))
        im = jnp.pad(im, (0, pad))

    re_slab = re.reshape(-1, LANE)
    im_slab = im.reshape(-1, LANE)

    out_re, out_im = _pallas_sigmoid_pair(re_slab, im_slab)
    out_re = out_re.reshape(-1)
    out_im = out_im.reshape(-1)
    if rem:
        out_re = out_re[:n]
        out_im = out_im[:n]

    return jax.lax.complex(out_re.reshape(x.shape), out_im.reshape(x.shape))


if __name__ == "__main__":
    key = jax.random.PRNGKey(0)
    k_re, k_im = jax.random.split(key)
    B, C, H, W = 2, 4, 16, 16  # NCHW, matching the PyTorch convention
    x_re = jax.random.normal(k_re, (B, C, H, W), dtype=jnp.float32)
    x_im = jax.random.normal(k_im, (B, C, H, W), dtype=jnp.float32)
    x = jax.lax.complex(x_re, x_im)

    out = jax.block_until_ready(complex_sigmoid(x))

    # reference check in plain JAX
    ref = jax.lax.complex(jax.nn.sigmoid(x_re), jax.nn.sigmoid(x_im))
    assert out.shape == x.shape and out.dtype == jnp.complex64
    assert jnp.allclose(out, ref, atol=1e-6, rtol=1e-6)
    print("KERNEL_OK")
</pallas_src>

<mosaic_0001>
module attributes {stable_mosaic.version = 11 : i64} {
  func.func @_complex_sigmoid_kernel(%arg0: i32, %arg1: memref<16x128xf32, #tpu.memory_space<vmem>>, %arg2: memref<16x128xf32, #tpu.memory_space<vmem>>, %arg3: memref<16x128xf32, #tpu.memory_space<vmem>>, %arg4: memref<16x128xf32, #tpu.memory_space<vmem>>) attributes {dimension_semantics = [#tpu.dimension_semantics<parallel>], iteration_bounds = array<i64: 1>, scalar_prefetch = 0 : i64, scratch_operands = 0 : i64, tpu.core_type = #tpu.core_type<tc>, window_params = [{transform_indices = @transform_0, window_bounds = array<i64: 16, 128>}, {transform_indices = @transform_1, window_bounds = array<i64: 16, 128>}, {transform_indices = @transform_2, window_bounds = array<i64: 16, 128>}, {transform_indices = @transform_3, window_bounds = array<i64: 16, 128>}]} {
    %c0 = arith.constant 0 : index
    %c0_0 = arith.constant 0 : index
    %0 = vector.load %arg1[%c0, %c0_0] : memref<16x128xf32, #tpu.memory_space<vmem>>, vector<16x128xf32>
    %1 = arith.negf %0 : vector<16x128xf32>
    %2 = math.exp %1 : vector<16x128xf32>
    %cst = arith.constant 1.000000e+00 : f32
    %3 = vector.broadcast %cst : f32 to vector<16x128xf32>
    %4 = arith.addf %3, %2 : vector<16x128xf32>
    %5 = arith.divf %3, %4 : vector<16x128xf32>
    %c0_1 = arith.constant 0 : index
    %c0_2 = arith.constant 0 : index
    %6 = vector.load %arg3[%c0_1, %c0_2] : memref<16x128xf32, #tpu.memory_space<vmem>>, vector<16x128xf32>
    tpu.vector_store %arg3[%c0_1, %c0_2], %5 {strides = array<i32>} : memref<16x128xf32, #tpu.memory_space<vmem>>, vector<16x128xf32>,
    %c0_3 = arith.constant 0 : index
    %c0_4 = arith.constant 0 : index
    %7 = vector.load %arg2[%c0_3, %c0_4] : memref<16x128xf32, #tpu.memory_space<vmem>>, vector<16x128xf32>
    %8 = arith.negf %7 : vector<16x128xf32>
    %9 = math.exp %8 : vector<16x128xf32>
    %cst_5 = arith.constant 1.000000e+00 : f32
    %10 = vector.broadcast %cst_5 : f32 to vector<16x128xf32>
    %11 = arith.addf %10, %9 : vector<16x128xf32>
    %12 = arith.divf %10, %11 : vector<16x128xf32>
    %c0_6 = arith.constant 0 : index
    %c0_7 = arith.constant 0 : index
    %13 = vector.load %arg4[%c0_6, %c0_7] : memref<16x128xf32, #tpu.memory_space<vmem>>, vector<16x128xf32>
    tpu.vector_store %arg4[%c0_6, %c0_7], %12 {strides = array<i32>} : memref<16x128xf32, #tpu.memory_space<vmem>>, vector<16x128xf32>,
    return
  }
  func.func @transform_0(%arg0: i32) -> (i32, i32) {
    %c0_i32 = arith.constant 0 : i32
    %c0_i32_0 = arith.constant 0 : i32
    return %arg0, %c0_i32 : i32, i32
  }
  func.func @transform_1(%arg0: i32) -> (i32, i32) {
    %c0_i32 = arith.constant 0 : i32
    %c0_i32_0 = arith.constant 0 : i32
    return %arg0, %c0_i32 : i32, i32
  }
  func.func @transform_2(%arg0: i32) -> (i32, i32) {
    %c0_i32 = arith.constant 0 : i32
    %c0_i32_0 = arith.constant 0 : i32
    return %arg0, %c0_i32 : i32, i32
  }
  func.func @transform_3(%arg0: i32) -> (i32, i32) {
    %c0_i32 = arith.constant 0 : i32
    %c0_i32_0 = arith.constant 0 : i32
    return %arg0, %c0_i32 : i32, i32
  }
}

</mosaic_0001>

<llo_original>
// kernel: custom-call
$region0: #{custom-call}
  %s0 = inlined_call_operand.hbm [shape: c64[2,4,16,16], index: 0, kind: input, shape index: {}]
  %s1 = inlined_call_operand.vmem [shape: f32[2,4,16,16], index: 1, kind: output, shape index: {}]
  $region1: #{custom-call} parent=0
    #allocation0 [shape = 's32[1]{0}', space=sflag, size = 0x4, scoped, tag = 'scoped memory for custom-call']
    %2 = vsyncpa [#allocation0], 0
    %s3 = sshll.u32 %s1, 4
    %s4 = int_to_ptr.vmem [resolvable:$true] %s3
    %6 = dma.hbm_to_vmem [thread:$0]  %s0, 2048, %s4, [#allocation0]
    %7 = dma.done [#allocation0], 2048
    %8 = vsyncpa [#allocation0], 1

// kernel: custom-call.1
$region0: #{custom-call.1}
  %s0 = inlined_call_operand.hbm [shape: c64[2,4,16,16], index: 0, kind: input, shape index: {}]
  %s1 = inlined_call_operand.vmem [shape: f32[2,4,16,16], index: 1, kind: output, shape index: {}]
  %s2 = scalar_lea.hbm %s0, 2048
  $region1: #{custom-call.1} parent=0
    #allocation0 [shape = 's32[1]{0}', space=sflag, size = 0x4, scoped, tag = 'scoped memory for custom-call.1']
    %3 = vsyncpa [#allocation0], 0
    %s4 = sshll.u32 %s1, 4
    %s5 = int_to_ptr.vmem [resolvable:$true] %s4
    %7 = dma.hbm_to_vmem [thread:$0]  %s2, 2048, %s5, [#allocation0]
    %8 = dma.done [#allocation0], 2048
    %9 = vsyncpa [#allocation0], 1

// kernel: custom-call.2
$region0: #{custom-call.2}
  %s0 = inlined_call_operand.vmem [shape: f32[2,4,16,16], index: 0, kind: input, shape index: {}]
  %s1 = inlined_call_operand.vmem [shape: f32[2,4,16,16], index: 1, kind: input, shape index: {}]
  %s2 = inlined_call_operand.hbm [shape: c64[2,4,16,16], index: 2, kind: output, shape index: {}]
  %s3 = scalar_lea.hbm %s2, 2048
  $region1: #{custom-call.2} parent=0
    #allocation0 [shape = 's32[1]{0}', space=sflag, size = 0x4, scoped, tag = 'scoped memory for custom-call.2']
    %4 = vsyncpa [#allocation0], 0
    %s5 = sshll.u32 %s0, 4
    %s6 = int_to_ptr.vmem [resolvable:$true] %s5
    %8 = dma.vmem_to_hbm [thread:$0]  %s6, 2048, %s2, [#allocation0]
    %9 = dma.done [#allocation0], 2048
    %10 = vsyncpa [#allocation0], 1
  $region2: #{custom-call.2} parent=0
    #allocation1 [shape = 's32[1]{0}', space=sflag, size = 0x4, scoped, tag = 'scoped memory for custom-call.2']
    %11 = vsyncpa [#allocation1], 0
    %s12 = sshll.u32 %s1, 4
    %s13 = int_to_ptr.vmem [resolvable:$true] %s12
    %15 = dma.vmem_to_hbm [thread:$0]  %s13, 2048, %s3, [#allocation1]
    %16 = dma.done [#allocation1], 2048
    %17 = vsyncpa [#allocation1], 1

// kernel: complex_sigmoid.1
$region0: #{complex_sigmoid.1}
  #allocation0 [shape = 'u32[]', space=smem, size = 0x4, offset = 0x4, fixed_abs, tag = 'smem constant byte address 0x4 - core index']
  #allocation1 [shape = 'u32[144,128]{1,0:T(1,128)}', space=vmem, size = 0x12000, scoped, tag = 'internal scratch']
  %s0 = inlined_call_operand.vmem [shape: f32[16,128], index: 0, kind: input, shape index: {}, may-alias: {0,2}]
  %s1 = inlined_call_operand.vmem [shape: f32[16,128], index: 1, kind: input, shape index: {}, may-alias: {1,3}]
  %s2 = inlined_call_operand.vmem [shape: f32[16,128], index: 2, kind: output, shape index: {0}, may-alias: {0,2}]
  %s3 = inlined_call_operand.vmem [shape: f32[16,128], index: 3, kind: output, shape index: {1}, may-alias: {1,3}]
  %4 = xla_tuple %s2, %s3
  %s5 = sld [smem:[#allocation0]]
  $region26: #{complex_sigmoid.1} parent=0
    _
  %s7 = ssub.s32 1, %s5
  %s8 = scalar_select 0, %s7, %s5
  // Predicated region
  $region2: #{complex_sigmoid.1} parent=0 // pred_check
    _
  $region3: #{complex_sigmoid.1} parent=0 // pred_check_branch
    %10 = sbr.rel (0) target = $region5
  $region4: #{complex_sigmoid.1} parent=0 // pred_region
    _
  $region5: #{complex_sigmoid.1} parent=0 // pred_fallthru
    _
  // Predicated region
  $region6: #{complex_sigmoid.1} parent=0 // pred_check
    _
  $region7: #{complex_sigmoid.1} parent=0 // pred_check_branch
    %12 = sbr.rel (0) target = $region9
  $region8: #{complex_sigmoid.1} parent=0 // pred_region
    _
  $region9: #{complex_sigmoid.1} parent=0 // pred_fallthru
    _
  %v13 = vld [vmem:[%s0] sm:$0xff]
  %v14 = vld [vmem:[%s0 + $0x8] sm:$0xff]
  %v15 = vxor.u32 %v13, 2147483648
  %v16 = vxor.u32 %v14, 2147483648
  %v17 = vmul.f32 %v15, 1.442695
  %v18 = vpow.pop %v17
  %v19 = vmul.f32 %v16, 1.442695
  %v20 = vpow.pop %v19
  %v21 = vadd.f32 %v18, 1.0
  %v22 = vadd.f32 %v20, 1.0
  %v23 = vrcp.pop %v21
  %v24 = vmul.f32 1.0, %v23
  %v25 = vrcp.pop %v22
  %v26 = vmul.f32 1.0, %v25
  %27 = vst [vmem:[%s2] sm:$0xff] %v24
  %28 = vst [vmem:[%s2 + $0x8] sm:$0xff] %v26
  %v29 = vld [vmem:[%s1] sm:$0xff]
  %v30 = vld [vmem:[%s1 + $0x8] sm:$0xff]
  %v31 = vxor.u32 %v29, 2147483648
  %v32 = vxor.u32 %v30, 2147483648
  %v33 = vmul.f32 %v31, 1.442695
  %v34 = vpow.pop %v33
  %v35 = vmul.f32 %v32, 1.442695
  %v36 = vpow.pop %v35
  %v37 = vadd.f32 %v34, 1.0
  %v38 = vadd.f32 %v36, 1.0
  %v39 = vrcp.pop %v37
  %v40 = vmul.f32 1.0, %v39
  %v41 = vrcp.pop %v38
  %v42 = vmul.f32 1.0, %v41
  %43 = vst [vmem:[%s3] sm:$0xff] %v40
  %44 = vst [vmem:[%s3 + $0x8] sm:$0xff] %v42
  // Predicated region
  $region10: #{complex_sigmoid.1} parent=0 // pred_check
    _
  $region11: #{complex_sigmoid.1} parent=0 // pred_check_branch
    %46 = sbr.rel (0) target = $region13
  $region12: #{complex_sigmoid.1} parent=0 // pred_region
    _
  $region13: #{complex_sigmoid.1} parent=0 // pred_fallthru
    _
  // Predicated region
  $region14: #{complex_sigmoid.1} parent=0 // pred_check
    _
  $region15: #{complex_sigmoid.1} parent=0 // pred_check_branch
    %48 = sbr.rel (0) target = $region17
  $region16: #{complex_sigmoid.1} parent=0 // pred_region
    _
  $region17: #{complex_sigmoid.1} parent=0 // pred_fallthru
    _
  // Predicated region
  $region18: #{complex_sigmoid.1} parent=0 // pred_check
    _
  $region19: #{complex_sigmoid.1} parent=0 // pred_check_branch
    %50 = sbr.rel (0) target = $region21
  $region20: #{complex_sigmoid.1} parent=0 // pred_region
    _
  $region21: #{complex_sigmoid.1} parent=0 // pred_fallthru
    _
  // Predicated region
  $region22: #{complex_sigmoid.1} parent=0 // pred_check
    _
  $region23: #{complex_sigmoid.1} parent=0 // pred_check_branch
    %52 = sbr.rel (0) target = $region25
  $region24: #{complex_sigmoid.1} parent=0 // pred_region
    _
  $region25: #{complex_sigmoid.1} parent=0 // pred_fallthru
    _

</llo_original>
